<compile_context>
chip_gen: v5e
topology: v5e:2x2
jax: 0.10.0
libtpu: 0.0.40
codegen_flags: <defaults>
</compile_context>

<pallas_src>
import numpy as np

import jax
import jax.numpy as jnp
from jax import lax
from jax.experimental import pallas as pl
from jax.experimental.pallas import tpu as pltpu


# ------------------------------ small helpers ------------------------------ #
def _round_up(x, m):
    return ((x + m - 1) // m) * m


def _vmem_capacity_bytes():
    try:
        info = pltpu.get_tpu_info()
        cap = int(getattr(info, "vmem_capacity_bytes", 0))
        if cap > 0:
            return cap
    except Exception:
        pass
    return 64 * 2 ** 20      # conservative default (v7x per-TensorCore VMEM)


def _pick_tile(n_rows, n_chs, n_els, batch):
    """Chip-aware node-tile size + VMEM limit for the fused forward kernel."""
    vmem_cap = _vmem_capacity_bytes()
    vmem_limit = int(min(0.75 * vmem_cap, 100 * 2 ** 20))   # ~96MiB v5e/v6e, ~48MiB v7x
    # element_mars stays resident in VMEM (assume the pipeline double-buffers it)
    elem_bytes = 2 * _round_up(n_els, 8) * _round_up(batch, 128) * 4
    margin = 4 * 2 ** 20
    budget = max(vmem_limit - elem_bytes - margin, 0)
    # per node-row: gather scratch (C*B f32) + double-buffered out (2*B)
    #               + double-buffered lane-padded params tile (2*128)
    bp = _round_up(batch, 128)
    row_bytes = 4 * (n_chs * bp + 2 * bp + 2 * 128)
    tn = budget // row_bytes
    tn = int(max(8, min(1024, tn)))
    tn -= tn % 8
    tn = max(tn, 8)
    # Guarantee >= 2 grid steps whenever there is enough work: v7x has two
    # TensorCores sharing the 'parallel' axis, and the pipeline needs >= 2
    # steps to overlap DMA with compute on every generation.
    if n_rows > 8:
        tn = min(tn, _round_up(-(-n_rows // 2), 8))
    n_tiles = -(-n_rows // tn)
    return tn, n_tiles, vmem_limit


# ----------------------------- Pallas kernel ------------------------------ #
def _sum_layer_fwd_kernel(cids_ref, elem_ref, par_ref, out_ref, stage_ref):
    """Fused gather + weighted log-sum-exp over children for one node tile.

    cids_ref : SMEM [Np*C]     int32  flat child ids (scalar prefetch)
    elem_ref : VMEM [E, B]     f32    full element_mars, resident across grid
    par_ref  : VMEM [tn, C]    f32    gathered (masked) compact edge params
    out_ref  : VMEM [tn, B]    f32    parent log-marginals
    stage_ref: VMEM [C, tn, B] f32    gathered child rows (scratch)
    """
    C, tn, B = stage_ref.shape
    base = pl.program_id(0) * tn

    # ---- phase 1: in-kernel row gather (no [C, N, B] slab through HBM) ----
    def gather_row(r):
        flat = (base + r) * C
        for c in range(C):                                   # C is small & static
            cid = cids_ref[flat + c]
            stage_ref[c, pl.ds(r, 1), :] = elem_ref[pl.ds(cid, 1), :]

    if tn <= 32:
        for r in range(tn):                                  # static unroll
            gather_row(r)
    else:
        def body(r, carry):
            gather_row(r)
            return carry
        lax.fori_loop(0, tn, body, 0, unroll=False)

    # ---- phase 2: accumulator over children (no [C, tn, B] live value) ----
    m = stage_ref[0]
    for c in range(1, C):
        m = jnp.maximum(m, stage_ref[c])                     # [tn, B] VPU maxes
    acc = jnp.exp(stage_ref[0] - m) * par_ref[:, 0:1]
    for c in range(1, C):
        acc = acc + jnp.exp(stage_ref[c] - m) * par_ref[:, c:c + 1]
    acc = jnp.maximum(acc, 1e-10)                            # clamp(min=1e-10)
    out_ref[...] = (jnp.log(acc) + m).astype(out_ref.dtype)


# --------------------------- fused forward call ---------------------------- #
@jax.jit
def _sum_layer_forward_fused(element_mars, params_1d, pids, pmask, cids):
    """All-groups fused forward; returns [N, B] parent log-marginals in
    concatenated-group node order.

    element_mars : [E, B] f32
    params_1d    : [P]    f32
    pids, cids   : [N, C] int32 (groups padded to a common C; padded edges
                                 duplicate child 0 and carry a zero mask)
    pmask        : [N, C] f32
    """
    E, B = element_mars.shape
    N, C = cids.shape
    tn, n_tiles, vmem_limit = _pick_tile(N, C, E, B)
    Np = n_tiles * tn

    # Tiny per-call glue: compact edge-parameter gather ([N, C], KB-scale) and
    # row padding of the small index tables only -- never the activations.
    epars = params_1d[pids] * pmask                              # [N, C]
    if Np != N:
        epars = jnp.pad(epars, ((0, Np - N), (0, 0)))
        cids = jnp.pad(cids, ((0, Np - N), (0, 0)))              # padded rows -> child 0
    cids_flat = cids.reshape(-1).astype(jnp.int32)               # [Np * C]

    grid_spec = pltpu.PrefetchScalarGridSpec(
        num_scalar_prefetch=1,
        grid=(n_tiles,),
        in_specs=[
            pl.BlockSpec((E, B), lambda i, cids_ref: (0, 0)),    # VMEM-resident
            pl.BlockSpec((tn, C), lambda i, cids_ref: (i, 0)),   # compact params
        ],
        out_specs=pl.BlockSpec((tn, B), lambda i, cids_ref: (i, 0)),
        scratch_shapes=[pltpu.VMEM((C, tn, B), jnp.float32)],
    )
    out = pl.pallas_call(
        _sum_layer_fwd_kernel,
        out_shape=jax.ShapeDtypeStruct((Np, B), jnp.float32),
        grid_spec=grid_spec,
        compiler_params=pltpu.CompilerParams(
            dimension_semantics=("parallel",),
            vmem_limit_bytes=vmem_limit),
    )(cids_flat, element_mars, epars)
    return out[:N]


# ------------------------------ SumLayer port ------------------------------ #
class SumLayerJax:
    """Minimal JAX port of pyjuice SumLayer's default (log-space) forward.

    Only the index tensors needed by `_dense_forward_pass`
    (grouped_nids / grouped_cids / grouped_pids) are kept; all forward groups
    are fused into a single Pallas launch.
    """
    # TODO(synk): sample()/backward() paths (index_add scatters, categorical
    # sampling) are not ported; only the forward hot path is implemented.

    def __init__(self, grouped_nids, grouped_cids, grouped_pids):
        self.grouped_nids = [np.asarray(x).astype(np.int32) for x in grouped_nids]
        self.grouped_cids = [np.asarray(x).astype(np.int32) for x in grouped_cids]
        self.grouped_pids = [np.asarray(x).astype(np.int32) for x in grouped_pids]
        self.num_forward_groups = len(grouped_nids)

        # Fuse all groups into one flat table padded to a common child count.
        c_max = max(int(c.shape[1]) for c in self.grouped_cids)
        cids_rows, pids_rows, mask_rows, nid_rows = [], [], [], []
        for nids, cids, pids in zip(self.grouped_nids, self.grouped_cids,
                                    self.grouped_pids):
            n_g, c_g = cids.shape
            pad = c_max - c_g
            # Padded edges duplicate child 0 (leaves maxval untouched) and get
            # a zero parameter via the mask -> padded math is bit-identical.
            cids_p = np.concatenate(
                [cids, np.repeat(cids[:, :1], pad, axis=1)], axis=1)
            pids_p = np.concatenate(
                [pids, np.zeros((n_g, pad), np.int32)], axis=1)
            mask_p = np.concatenate(
                [np.ones((n_g, c_g), np.float32),
                 np.zeros((n_g, pad), np.float32)], axis=1)
            cids_rows.append(cids_p)
            pids_rows.append(pids_p)
            mask_rows.append(mask_p)
            nid_rows.append(nids)
        self._cids = np.concatenate(cids_rows, axis=0)            # [N, C]
        self._pids = np.concatenate(pids_rows, axis=0)            # [N, C]
        self._pmask = np.concatenate(mask_rows, axis=0)           # [N, C]
        self._nids = np.concatenate(nid_rows, axis=0)             # [N]
        self._num_nodes = int(self._nids.shape[0])
        base = int(self._nids[0])
        self._contiguous = bool(np.array_equal(
            self._nids,
            np.arange(base, base + self._num_nodes, dtype=self._nids.dtype)))
        self._node_base = base

        self._cids_dev = jnp.asarray(self._cids)
        self._pids_dev = jnp.asarray(self._pids)
        self._pmask_dev = jnp.asarray(self._pmask)
        self._nids_dev = jnp.asarray(self._nids)

    def forward(self, node_mars, element_mars, params):
        # node_mars    : [num_nodes, B]
        # element_mars : [max_num_els, B]
        # params       : [num_params], [num_params, 1] or [num_params, B]
        if params.ndim == 2 and params.shape[1] == 1:
            params = params[:, 0]
        E, B = element_mars.shape
        elem_vmem_bytes = 2 * _round_up(E, 8) * _round_up(B, 128) * 4
        if params.ndim == 2 or elem_vmem_bytes > _vmem_capacity_bytes() // 2:
            # TODO(synk): per-batch params and very large element_mars (that do
            # not fit VMEM-resident) should use an HBM-resident ref
            # (memory_space=pl.ANY) with a manual make_async_copy row gather;
            # fall back to plain XLA for those cases.
            return self._fallback_forward(node_mars, element_mars, params)

        out = _sum_layer_forward_fused(
            element_mars.astype(jnp.float32), params.astype(jnp.float32),
            self._pids_dev, self._pmask_dev, self._cids_dev)
        out = out.astype(node_mars.dtype)
        if self._contiguous:
            # Layer nodes are one contiguous row range -> cheap slice update,
            # no scatter read-modify-write.
            # TODO(synk): alias node_mars into the pallas_call
            # (input_output_aliases) so even this copy disappears.
            return lax.dynamic_update_slice(node_mars, out, (self._node_base, 0))
        return node_mars.at[self._nids_dev].set(out)

    def _fallback_forward(self, node_mars, element_mars, params):
        if params.ndim == 1:
            params = params[:, None]
        for nids, cids, pids in zip(self.grouped_nids, self.grouped_cids,
                                    self.grouped_pids):
            ch_mars = element_mars[jnp.asarray(cids)]
            maxval = jnp.max(ch_mars, axis=1, keepdims=True)
            s = jnp.sum(jnp.exp(ch_mars - maxval) * params[jnp.asarray(pids)],
                        axis=1)
            s = jnp.maximum(s, 1e-10)
            node_mars = node_mars.at[jnp.asarray(nids)].set(
                (jnp.log(s) + maxval[:, 0, :]).astype(node_mars.dtype))
        return node_mars


# Pure-JAX reference for correctness checking (mirrors _dense_forward_pass).
def _reference_forward(node_mars, element_mars, params,
                       grouped_nids, grouped_cids, grouped_pids):
    if params.ndim == 1:
        params = params[:, None]
    for nids, cids, pids in zip(grouped_nids, grouped_cids, grouped_pids):
        ch_mars = element_mars[cids]                      # [N, C, B]
        maxval = jnp.max(ch_mars, axis=1, keepdims=True)
        s = jnp.sum(jnp.exp(ch_mars - maxval) * params[pids], axis=1)
        s = jnp.maximum(s, 1e-10)
        node_mars = node_mars.at[nids].set(jnp.log(s) + maxval[:, 0, :])
    return node_mars


# --------------------------------- main ------------------------------------ #
if __name__ == "__main__":
    key = jax.random.PRNGKey(0)
    k1, k2, k3, k4 = jax.random.split(key, 4)

    # Small synthetic sizes consistent with the module's forward.
    # B = 128 keeps the output lane-dense (last dim multiple of 128).
    B = 128               # batch
    max_num_els = 32      # child (product-layer) element count
    num_nodes_total = 24  # total nodes in the circuit so far; layer owns [8, 24)
    n1, c1 = 8, 4         # forward group 1: 8 nodes, 4 children each
    n2, c2 = 8, 2         # forward group 2: 8 nodes, 2 children each
    num_params = n1 * c1 + n2 * c2   # 40

    # Deterministic synthetic index structures (two forward groups, as the
    # module's n_chs-based grouping would produce).
    nids1 = jnp.arange(8, 8 + n1, dtype=jnp.int32)
    nids2 = jnp.arange(8 + n1, 8 + n1 + n2, dtype=jnp.int32)
    cids1 = jax.random.randint(k1, (n1, c1), minval=1, maxval=max_num_els,
                               dtype=jnp.int32)
    cids2 = jax.random.randint(k4, (n2, c2), minval=1, maxval=max_num_els,
                               dtype=jnp.int32)
    pids1 = jnp.arange(0, n1 * c1, dtype=jnp.int32).reshape(n1, c1)
    pids2 = jnp.arange(n1 * c1, num_params, dtype=jnp.int32).reshape(n2, c2)

    grouped_nids = [nids1, nids2]
    grouped_cids = [cids1, cids2]
    grouped_pids = [pids1, pids2]

    layer = SumLayerJax(grouped_nids, grouped_cids, grouped_pids)

    # Deterministic inputs / parameters.
    element_mars = jax.random.normal(k2, (max_num_els, B), dtype=jnp.float32)
    node_mars = jnp.zeros((num_nodes_total, B), dtype=jnp.float32)
    params = jax.random.uniform(k3, (num_params,), dtype=jnp.float32,
                                minval=0.05, maxval=1.0)

    out_node_mars = layer.forward(node_mars, element_mars, params)
    out_node_mars = jax.block_until_ready(out_node_mars)

    ref = _reference_forward(node_mars, element_mars, params,
                             grouped_nids, grouped_cids, grouped_pids)
    ref = jax.block_until_ready(ref)

    assert jnp.allclose(out_node_mars, ref, atol=1e-5, rtol=1e-5), (
        "Pallas SumLayer forward mismatch vs reference")
    print("KERNEL_OK")
</pallas_src>

<mosaic_0001>
module attributes {stable_mosaic.version = 11 : i64} {
  func.func @_sum_layer_fwd_kernel(%arg0: i32, %arg1: memref<64xi32, #tpu.memory_space<smem>>, %arg2: memref<32x128xf32, #tpu.memory_space<vmem>>, %arg3: memref<8x4xf32, #tpu.memory_space<vmem>>, %arg4: memref<8x128xf32, #tpu.memory_space<vmem>>, %arg5: memref<4x8x128xf32, #tpu.memory_space<vmem>>) attributes {dimension_semantics = [#tpu.dimension_semantics<parallel>], iteration_bounds = array<i64: 2>, scalar_prefetch = 1 : i64, scratch_operands = 1 : i64, tpu.core_type = #tpu.core_type<tc>, window_params = [{pipeline_mode = #tpu.pipeline_mode<synchronous>, transform_indices = @transform_0, window_bounds = array<i64: 32, 128>}, {transform_indices = @transform_1, window_bounds = array<i64: 8, 4>}, {transform_indices = @transform_2, window_bounds = array<i64: 8, 128>}]} {
    %c8_i32 = arith.constant 8 : i32
    %0 = arith.muli %arg0, %c8_i32 : i32
    %c0_i32 = arith.constant 0 : i32
    %1 = arith.addi %0, %c0_i32 : i32
    %c4_i32 = arith.constant 4 : i32
    %2 = arith.muli %1, %c4_i32 : i32
    %c0_i32_0 = arith.constant 0 : i32
    %3 = arith.addi %2, %c0_i32_0 : i32
    %4 = arith.index_cast %3 : i32 to index
    %5 = memref.load %arg1[%4] : memref<64xi32, #tpu.memory_space<smem>>
    %6 = arith.index_cast %5 : i32 to index
    %c0 = arith.constant 0 : index
    %7 = vector.load %arg2[%6, %c0] : memref<32x128xf32, #tpu.memory_space<vmem>>, vector<1x128xf32>
    %c0_1 = arith.constant 0 : index
    %c0_2 = arith.constant 0 : index
    %c0_3 = arith.constant 0 : index
    %8 = vector.load %arg5[%c0_1, %c0_2, %c0_3] : memref<4x8x128xf32, #tpu.memory_space<vmem>>, vector<1x1x128xf32>
    %9 = vector.shape_cast %8 : vector<1x1x128xf32> to vector<1x128xf32>
    %10 = vector.shape_cast %7 : vector<1x128xf32> to vector<1x1x128xf32>
    tpu.vector_store %arg5[%c0_1, %c0_2, %c0_3], %10 {strides = array<i32>} : memref<4x8x128xf32, #tpu.memory_space<vmem>>, vector<1x1x128xf32>,
    %c1_i32 = arith.constant 1 : i32
    %11 = arith.addi %2, %c1_i32 : i32
    %12 = arith.index_cast %11 : i32 to index
    %13 = memref.load %arg1[%12] : memref<64xi32, #tpu.memory_space<smem>>
    %14 = arith.index_cast %13 : i32 to index
    %c0_4 = arith.constant 0 : index
    %15 = vector.load %arg2[%14, %c0_4] : memref<32x128xf32, #tpu.memory_space<vmem>>, vector<1x128xf32>
    %c1 = arith.constant 1 : index
    %c0_5 = arith.constant 0 : index
    %c0_6 = arith.constant 0 : index
    %16 = vector.load %arg5[%c1, %c0_5, %c0_6] : memref<4x8x128xf32, #tpu.memory_space<vmem>>, vector<1x1x128xf32>
    %17 = vector.shape_cast %16 : vector<1x1x128xf32> to vector<1x128xf32>
    %18 = vector.shape_cast %15 : vector<1x128xf32> to vector<1x1x128xf32>
    tpu.vector_store %arg5[%c1, %c0_5, %c0_6], %18 {strides = array<i32>} : memref<4x8x128xf32, #tpu.memory_space<vmem>>, vector<1x1x128xf32>,
    %c2_i32 = arith.constant 2 : i32
    %19 = arith.addi %2, %c2_i32 : i32
    %20 = arith.index_cast %19 : i32 to index
    %21 = memref.load %arg1[%20] : memref<64xi32, #tpu.memory_space<smem>>
    %22 = arith.index_cast %21 : i32 to index
    %c0_7 = arith.constant 0 : index
    %23 = vector.load %arg2[%22, %c0_7] : memref<32x128xf32, #tpu.memory_space<vmem>>, vector<1x128xf32>
    %c2 = arith.constant 2 : index
    %c0_8 = arith.constant 0 : index
    %c0_9 = arith.constant 0 : index
    %24 = vector.load %arg5[%c2, %c0_8, %c0_9] : memref<4x8x128xf32, #tpu.memory_space<vmem>>, vector<1x1x128xf32>
    %25 = vector.shape_cast %24 : vector<1x1x128xf32> to vector<1x128xf32>
    %26 = vector.shape_cast %23 : vector<1x128xf32> to vector<1x1x128xf32>
    tpu.vector_store %arg5[%c2, %c0_8, %c0_9], %26 {strides = array<i32>} : memref<4x8x128xf32, #tpu.memory_space<vmem>>, vector<1x1x128xf32>,
    %c3_i32 = arith.constant 3 : i32
    %27 = arith.addi %2, %c3_i32 : i32
    %28 = arith.index_cast %27 : i32 to index
    %29 = memref.load %arg1[%28] : memref<64xi32, #tpu.memory_space<smem>>
    %30 = arith.index_cast %29 : i32 to index
    %c0_10 = arith.constant 0 : index
    %31 = vector.load %arg2[%30, %c0_10] : memref<32x128xf32, #tpu.memory_space<vmem>>, vector<1x128xf32>
    %c3 = arith.constant 3 : index
    %c0_11 = arith.constant 0 : index
    %c0_12 = arith.constant 0 : index
    %32 = vector.load %arg5[%c3, %c0_11, %c0_12] : memref<4x8x128xf32, #tpu.memory_space<vmem>>, vector<1x1x128xf32>
    %33 = vector.shape_cast %32 : vector<1x1x128xf32> to vector<1x128xf32>
    %34 = vector.shape_cast %31 : vector<1x128xf32> to vector<1x1x128xf32>
    tpu.vector_store %arg5[%c3, %c0_11, %c0_12], %34 {strides = array<i32>} : memref<4x8x128xf32, #tpu.memory_space<vmem>>, vector<1x1x128xf32>,
    %c1_i32_13 = arith.constant 1 : i32
    %35 = arith.addi %0, %c1_i32_13 : i32
    %c4_i32_14 = arith.constant 4 : i32
    %36 = arith.muli %35, %c4_i32_14 : i32
    %c0_i32_15 = arith.constant 0 : i32
    %37 = arith.addi %36, %c0_i32_15 : i32
    %38 = arith.index_cast %37 : i32 to index
    %39 = memref.load %arg1[%38] : memref<64xi32, #tpu.memory_space<smem>>
    %40 = arith.index_cast %39 : i32 to index
    %c0_16 = arith.constant 0 : index
    %41 = vector.load %arg2[%40, %c0_16] : memref<32x128xf32, #tpu.memory_space<vmem>>, vector<1x128xf32>
    %c0_17 = arith.constant 0 : index
    %c1_18 = arith.constant 1 : index
    %c0_19 = arith.constant 0 : index
    %42 = vector.load %arg5[%c0_17, %c1_18, %c0_19] : memref<4x8x128xf32, #tpu.memory_space<vmem>>, vector<1x1x128xf32>
    %43 = vector.shape_cast %42 : vector<1x1x128xf32> to vector<1x128xf32>
    %44 = vector.shape_cast %41 : vector<1x128xf32> to vector<1x1x128xf32>
    tpu.vector_store %arg5[%c0_17, %c1_18, %c0_19], %44 {strides = array<i32>} : memref<4x8x128xf32, #tpu.memory_space<vmem>>, vector<1x1x128xf32>,
    %c1_i32_20 = arith.constant 1 : i32
    %45 = arith.addi %36, %c1_i32_20 : i32
    %46 = arith.index_cast %45 : i32 to index
    %47 = memref.load %arg1[%46] : memref<64xi32, #tpu.memory_space<smem>>
    %48 = arith.index_cast %47 : i32 to index
    %c0_21 = arith.constant 0 : index
    %49 = vector.load %arg2[%48, %c0_21] : memref<32x128xf32, #tpu.memory_space<vmem>>, vector<1x128xf32>
    %c1_22 = arith.constant 1 : index
    %c1_23 = arith.constant 1 : index
    %c0_24 = arith.constant 0 : index
    %50 = vector.load %arg5[%c1_22, %c1_23, %c0_24] : memref<4x8x128xf32, #tpu.memory_space<vmem>>, vector<1x1x128xf32>
    %51 = vector.shape_cast %50 : vector<1x1x128xf32> to vector<1x128xf32>
    %52 = vector.shape_cast %49 : vector<1x128xf32> to vector<1x1x128xf32>
    tpu.vector_store %arg5[%c1_22, %c1_23, %c0_24], %52 {strides = array<i32>} : memref<4x8x128xf32, #tpu.memory_space<vmem>>, vector<1x1x128xf32>,
    %c2_i32_25 = arith.constant 2 : i32
    %53 = arith.addi %36, %c2_i32_25 : i32
    %54 = arith.index_cast %53 : i32 to index
    %55 = memref.load %arg1[%54] : memref<64xi32, #tpu.memory_space<smem>>
    %56 = arith.index_cast %55 : i32 to index
    %c0_26 = arith.constant 0 : index
    %57 = vector.load %arg2[%56, %c0_26] : memref<32x128xf32, #tpu.memory_space<vmem>>, vector<1x128xf32>
    %c2_27 = arith.constant 2 : index
    %c1_28 = arith.constant 1 : index
    %c0_29 = arith.constant 0 : index
    %58 = vector.load %arg5[%c2_27, %c1_28, %c0_29] : memref<4x8x128xf32, #tpu.memory_space<vmem>>, vector<1x1x128xf32>
    %59 = vector.shape_cast %58 : vector<1x1x128xf32> to vector<1x128xf32>
    %60 = vector.shape_cast %57 : vector<1x128xf32> to vector<1x1x128xf32>
    tpu.vector_store %arg5[%c2_27, %c1_28, %c0_29], %60 {strides = array<i32>} : memref<4x8x128xf32, #tpu.memory_space<vmem>>, vector<1x1x128xf32>,
    %c3_i32_30 = arith.constant 3 : i32
    %61 = arith.addi %36, %c3_i32_30 : i32
    %62 = arith.index_cast %61 : i32 to index
    %63 = memref.load %arg1[%62] : memref<64xi32, #tpu.memory_space<smem>>
    %64 = arith.index_cast %63 : i32 to index
    %c0_31 = arith.constant 0 : index
    %65 = vector.load %arg2[%64, %c0_31] : memref<32x128xf32, #tpu.memory_space<vmem>>, vector<1x128xf32>
    %c3_32 = arith.constant 3 : index
    %c1_33 = arith.constant 1 : index
    %c0_34 = arith.constant 0 : index
    %66 = vector.load %arg5[%c3_32, %c1_33, %c0_34] : memref<4x8x128xf32, #tpu.memory_space<vmem>>, vector<1x1x128xf32>
    %67 = vector.shape_cast %66 : vector<1x1x128xf32> to vector<1x128xf32>
    %68 = vector.shape_cast %65 : vector<1x128xf32> to vector<1x1x128xf32>
    tpu.vector_store %arg5[%c3_32, %c1_33, %c0_34], %68 {strides = array<i32>} : memref<4x8x128xf32, #tpu.memory_space<vmem>>, vector<1x1x128xf32>,
    %c2_i32_35 = arith.constant 2 : i32
    %69 = arith.addi %0, %c2_i32_35 : i32
    %c4_i32_36 = arith.constant 4 : i32
    %70 = arith.muli %69, %c4_i32_36 : i32
    %c0_i32_37 = arith.constant 0 : i32
    %71 = arith.addi %70, %c0_i32_37 : i32
    %72 = arith.index_cast %71 : i32 to index
    %73 = memref.load %arg1[%72] : memref<64xi32, #tpu.memory_space<smem>>
    %74 = arith.index_cast %73 : i32 to index
    %c0_38 = arith.constant 0 : index
    %75 = vector.load %arg2[%74, %c0_38] : memref<32x128xf32, #tpu.memory_space<vmem>>, vector<1x128xf32>
    %c0_39 = arith.constant 0 : index
    %c2_40 = arith.constant 2 : index
    %c0_41 = arith.constant 0 : index
    %76 = vector.load %arg5[%c0_39, %c2_40, %c0_41] : memref<4x8x128xf32, #tpu.memory_space<vmem>>, vector<1x1x128xf32>
    %77 = vector.shape_cast %76 : vector<1x1x128xf32> to vector<1x128xf32>
    %78 = vector.shape_cast %75 : vector<1x128xf32> to vector<1x1x128xf32>
    tpu.vector_store %arg5[%c0_39, %c2_40, %c0_41], %78 {strides = array<i32>} : memref<4x8x128xf32, #tpu.memory_space<vmem>>, vector<1x1x128xf32>,
    %c1_i32_42 = arith.constant 1 : i32
    %79 = arith.addi %70, %c1_i32_42 : i32
    %80 = arith.index_cast %79 : i32 to index
    %81 = memref.load %arg1[%80] : memref<64xi32, #tpu.memory_space<smem>>
    %82 = arith.index_cast %81 : i32 to index
    %c0_43 = arith.constant 0 : index
    %83 = vector.load %arg2[%82, %c0_43] : memref<32x128xf32, #tpu.memory_space<vmem>>, vector<1x128xf32>
    %c1_44 = arith.constant 1 : index
    %c2_45 = arith.constant 2 : index
    %c0_46 = arith.constant 0 : index
    %84 = vector.load %arg5[%c1_44, %c2_45, %c0_46] : memref<4x8x128xf32, #tpu.memory_space<vmem>>, vector<1x1x128xf32>
    %85 = vector.shape_cast %84 : vector<1x1x128xf32> to vector<1x128xf32>
    %86 = vector.shape_cast %83 : vector<1x128xf32> to vector<1x1x128xf32>
    tpu.vector_store %arg5[%c1_44, %c2_45, %c0_46], %86 {strides = array<i32>} : memref<4x8x128xf32, #tpu.memory_space<vmem>>, vector<1x1x128xf32>,
    %c2_i32_47 = arith.constant 2 : i32
    %87 = arith.addi %70, %c2_i32_47 : i32
    %88 = arith.index_cast %87 : i32 to index
    %89 = memref.load %arg1[%88] : memref<64xi32, #tpu.memory_space<smem>>
    %90 = arith.index_cast %89 : i32 to index
    %c0_48 = arith.constant 0 : index
    %91 = vector.load %arg2[%90, %c0_48] : memref<32x128xf32, #tpu.memory_space<vmem>>, vector<1x128xf32>
    %c2_49 = arith.constant 2 : index
    %c2_50 = arith.constant 2 : index
    %c0_51 = arith.constant 0 : index
    %92 = vector.load %arg5[%c2_49, %c2_50, %c0_51] : memref<4x8x128xf32, #tpu.memory_space<vmem>>, vector<1x1x128xf32>
    %93 = vector.shape_cast %92 : vector<1x1x128xf32> to vector<1x128xf32>
    %94 = vector.shape_cast %91 : vector<1x128xf32> to vector<1x1x128xf32>
    tpu.vector_store %arg5[%c2_49, %c2_50, %c0_51], %94 {strides = array<i32>} : memref<4x8x128xf32, #tpu.memory_space<vmem>>, vector<1x1x128xf32>,
    %c3_i32_52 = arith.constant 3 : i32
    %95 = arith.addi %70, %c3_i32_52 : i32
    %96 = arith.index_cast %95 : i32 to index
    %97 = memref.load %arg1[%96] : memref<64xi32, #tpu.memory_space<smem>>
    %98 = arith.index_cast %97 : i32 to index
    %c0_53 = arith.constant 0 : index
    %99 = vector.load %arg2[%98, %c0_53] : memref<32x128xf32, #tpu.memory_space<vmem>>, vector<1x128xf32>
    %c3_54 = arith.constant 3 : index
    %c2_55 = arith.constant 2 : index
    %c0_56 = arith.constant 0 : index
    %100 = vector.load %arg5[%c3_54, %c2_55, %c0_56] : memref<4x8x128xf32, #tpu.memory_space<vmem>>, vector<1x1x128xf32>
    %101 = vector.shape_cast %100 : vector<1x1x128xf32> to vector<1x128xf32>
    %102 = vector.shape_cast %99 : vector<1x128xf32> to vector<1x1x128xf32>
    tpu.vector_store %arg5[%c3_54, %c2_55, %c0_56], %102 {strides = array<i32>} : memref<4x8x128xf32, #tpu.memory_space<vmem>>, vector<1x1x128xf32>,
    %c3_i32_57 = arith.constant 3 : i32
    %103 = arith.addi %0, %c3_i32_57 : i32
    %c4_i32_58 = arith.constant 4 : i32
    %104 = arith.muli %103, %c4_i32_58 : i32
    %c0_i32_59 = arith.constant 0 : i32
    %105 = arith.addi %104, %c0_i32_59 : i32
    %106 = arith.index_cast %105 : i32 to index
    %107 = memref.load %arg1[%106] : memref<64xi32, #tpu.memory_space<smem>>
    %108 = arith.index_cast %107 : i32 to index
    %c0_60 = arith.constant 0 : index
    %109 = vector.load %arg2[%108, %c0_60] : memref<32x128xf32, #tpu.memory_space<vmem>>, vector<1x128xf32>
    %c0_61 = arith.constant 0 : index
    %c3_62 = arith.constant 3 : index
    %c0_63 = arith.constant 0 : index
    %110 = vector.load %arg5[%c0_61, %c3_62, %c0_63] : memref<4x8x128xf32, #tpu.memory_space<vmem>>, vector<1x1x128xf32>
    %111 = vector.shape_cast %110 : vector<1x1x128xf32> to vector<1x128xf32>
    %112 = vector.shape_cast %109 : vector<1x128xf32> to vector<1x1x128xf32>
    tpu.vector_store %arg5[%c0_61, %c3_62, %c0_63], %112 {strides = array<i32>} : memref<4x8x128xf32, #tpu.memory_space<vmem>>, vector<1x1x128xf32>,
    %c1_i32_64 = arith.constant 1 : i32
    %113 = arith.addi %104, %c1_i32_64 : i32
    %114 = arith.index_cast %113 : i32 to index
    %115 = memref.load %arg1[%114] : memref<64xi32, #tpu.memory_space<smem>>
    %116 = arith.index_cast %115 : i32 to index
    %c0_65 = arith.constant 0 : index
    %117 = vector.load %arg2[%116, %c0_65] : memref<32x128xf32, #tpu.memory_space<vmem>>, vector<1x128xf32>
    %c1_66 = arith.constant 1 : index
    %c3_67 = arith.constant 3 : index
    %c0_68 = arith.constant 0 : index
    %118 = vector.load %arg5[%c1_66, %c3_67, %c0_68] : memref<4x8x128xf32, #tpu.memory_space<vmem>>, vector<1x1x128xf32>
    %119 = vector.shape_cast %118 : vector<1x1x128xf32> to vector<1x128xf32>
    %120 = vector.shape_cast %117 : vector<1x128xf32> to vector<1x1x128xf32>
    tpu.vector_store %arg5[%c1_66, %c3_67, %c0_68], %120 {strides = array<i32>} : memref<4x8x128xf32, #tpu.memory_space<vmem>>, vector<1x1x128xf32>,
    %c2_i32_69 = arith.constant 2 : i32
    %121 = arith.addi %104, %c2_i32_69 : i32
    %122 = arith.index_cast %121 : i32 to index
    %123 = memref.load %arg1[%122] : memref<64xi32, #tpu.memory_space<smem>>
    %124 = arith.index_cast %123 : i32 to index
    %c0_70 = arith.constant 0 : index
    %125 = vector.load %arg2[%124, %c0_70] : memref<32x128xf32, #tpu.memory_space<vmem>>, vector<1x128xf32>
    %c2_71 = arith.constant 2 : index
    %c3_72 = arith.constant 3 : index
    %c0_73 = arith.constant 0 : index
    %126 = vector.load %arg5[%c2_71, %c3_72, %c0_73] : memref<4x8x128xf32, #tpu.memory_space<vmem>>, vector<1x1x128xf32>
    %127 = vector.shape_cast %126 : vector<1x1x128xf32> to vector<1x128xf32>
    %128 = vector.shape_cast %125 : vector<1x128xf32> to vector<1x1x128xf32>
    tpu.vector_store %arg5[%c2_71, %c3_72, %c0_73], %128 {strides = array<i32>} : memref<4x8x128xf32, #tpu.memory_space<vmem>>, vector<1x1x128xf32>,
    %c3_i32_74 = arith.constant 3 : i32
    %129 = arith.addi %104, %c3_i32_74 : i32
    %130 = arith.index_cast %129 : i32 to index
    %131 = memref.load %arg1[%130] : memref<64xi32, #tpu.memory_space<smem>>
    %132 = arith.index_cast %131 : i32 to index
    %c0_75 = arith.constant 0 : index
    %133 = vector.load %arg2[%132, %c0_75] : memref<32x128xf32, #tpu.memory_space<vmem>>, vector<1x128xf32>
    %c3_76 = arith.constant 3 : index
    %c3_77 = arith.constant 3 : index
    %c0_78 = arith.constant 0 : index
    %134 = vector.load %arg5[%c3_76, %c3_77, %c0_78] : memref<4x8x128xf32, #tpu.memory_space<vmem>>, vector<1x1x128xf32>
    %135 = vector.shape_cast %134 : vector<1x1x128xf32> to vector<1x128xf32>
    %136 = vector.shape_cast %133 : vector<1x128xf32> to vector<1x1x128xf32>
    tpu.vector_store %arg5[%c3_76, %c3_77, %c0_78], %136 {strides = array<i32>} : memref<4x8x128xf32, #tpu.memory_space<vmem>>, vector<1x1x128xf32>,
    %c4_i32_79 = arith.constant 4 : i32
    %137 = arith.addi %0, %c4_i32_79 : i32
    %c4_i32_80 = arith.constant 4 : i32
    %138 = arith.muli %137, %c4_i32_80 : i32
    %c0_i32_81 = arith.constant 0 : i32
    %139 = arith.addi %138, %c0_i32_81 : i32
    %140 = arith.index_cast %139 : i32 to index
    %141 = memref.load %arg1[%140] : memref<64xi32, #tpu.memory_space<smem>>
    %142 = arith.index_cast %141 : i32 to index
    %c0_82 = arith.constant 0 : index
    %143 = vector.load %arg2[%142, %c0_82] : memref<32x128xf32, #tpu.memory_space<vmem>>, vector<1x128xf32>
    %c0_83 = arith.constant 0 : index
    %c4 = arith.constant 4 : index
    %c0_84 = arith.constant 0 : index
    %144 = vector.load %arg5[%c0_83, %c4, %c0_84] : memref<4x8x128xf32, #tpu.memory_space<vmem>>, vector<1x1x128xf32>
    %145 = vector.shape_cast %144 : vector<1x1x128xf32> to vector<1x128xf32>
    %146 = vector.shape_cast %143 : vector<1x128xf32> to vector<1x1x128xf32>
    tpu.vector_store %arg5[%c0_83, %c4, %c0_84], %146 {strides = array<i32>} : memref<4x8x128xf32, #tpu.memory_space<vmem>>, vector<1x1x128xf32>,
    %c1_i32_85 = arith.constant 1 : i32
    %147 = arith.addi %138, %c1_i32_85 : i32
    %148 = arith.index_cast %147 : i32 to index
    %149 = memref.load %arg1[%148] : memref<64xi32, #tpu.memory_space<smem>>
    %150 = arith.index_cast %149 : i32 to index
    %c0_86 = arith.constant 0 : index
    %151 = vector.load %arg2[%150, %c0_86] : memref<32x128xf32, #tpu.memory_space<vmem>>, vector<1x128xf32>
    %c1_87 = arith.constant 1 : index
    %c4_88 = arith.constant 4 : index
    %c0_89 = arith.constant 0 : index
    %152 = vector.load %arg5[%c1_87, %c4_88, %c0_89] : memref<4x8x128xf32, #tpu.memory_space<vmem>>, vector<1x1x128xf32>
    %153 = vector.shape_cast %152 : vector<1x1x128xf32> to vector<1x128xf32>
    %154 = vector.shape_cast %151 : vector<1x128xf32> to vector<1x1x128xf32>
    tpu.vector_store %arg5[%c1_87, %c4_88, %c0_89], %154 {strides = array<i32>} : memref<4x8x128xf32, #tpu.memory_space<vmem>>, vector<1x1x128xf32>,
    %c2_i32_90 = arith.constant 2 : i32
    %155 = arith.addi %138, %c2_i32_90 : i32
    %156 = arith.index_cast %155 : i32 to index
    %157 = memref.load %arg1[%156] : memref<64xi32, #tpu.memory_space<smem>>
    %158 = arith.index_cast %157 : i32 to index
    %c0_91 = arith.constant 0 : index
    %159 = vector.load %arg2[%158, %c0_91] : memref<32x128xf32, #tpu.memory_space<vmem>>, vector<1x128xf32>
    %c2_92 = arith.constant 2 : index
    %c4_93 = arith.constant 4 : index
    %c0_94 = arith.constant 0 : index
    %160 = vector.load %arg5[%c2_92, %c4_93, %c0_94] : memref<4x8x128xf32, #tpu.memory_space<vmem>>, vector<1x1x128xf32>
    %161 = vector.shape_cast %160 : vector<1x1x128xf32> to vector<1x128xf32>
    %162 = vector.shape_cast %159 : vector<1x128xf32> to vector<1x1x128xf32>
    tpu.vector_store %arg5[%c2_92, %c4_93, %c0_94], %162 {strides = array<i32>} : memref<4x8x128xf32, #tpu.memory_space<vmem>>, vector<1x1x128xf32>,
    %c3_i32_95 = arith.constant 3 : i32
    %163 = arith.addi %138, %c3_i32_95 : i32
    %164 = arith.index_cast %163 : i32 to index
    %165 = memref.load %arg1[%164] : memref<64xi32, #tpu.memory_space<smem>>
    %166 = arith.index_cast %165 : i32 to index
    %c0_96 = arith.constant 0 : index
    %167 = vector.load %arg2[%166, %c0_96] : memref<32x128xf32, #tpu.memory_space<vmem>>, vector<1x128xf32>
    %c3_97 = arith.constant 3 : index
    %c4_98 = arith.constant 4 : index
    %c0_99 = arith.constant 0 : index
    %168 = vector.load %arg5[%c3_97, %c4_98, %c0_99] : memref<4x8x128xf32, #tpu.memory_space<vmem>>, vector<1x1x128xf32>
    %169 = vector.shape_cast %168 : vector<1x1x128xf32> to vector<1x128xf32>
    %170 = vector.shape_cast %167 : vector<1x128xf32> to vector<1x1x128xf32>
    tpu.vector_store %arg5[%c3_97, %c4_98, %c0_99], %170 {strides = array<i32>} : memref<4x8x128xf32, #tpu.memory_space<vmem>>, vector<1x1x128xf32>,
    %c5_i32 = arith.constant 5 : i32
    %171 = arith.addi %0, %c5_i32 : i32
    %c4_i32_100 = arith.constant 4 : i32
    %172 = arith.muli %171, %c4_i32_100 : i32
    %c0_i32_101 = arith.constant 0 : i32
    %173 = arith.addi %172, %c0_i32_101 : i32
    %174 = arith.index_cast %173 : i32 to index
    %175 = memref.load %arg1[%174] : memref<64xi32, #tpu.memory_space<smem>>
    %176 = arith.index_cast %175 : i32 to index
    %c0_102 = arith.constant 0 : index
    %177 = vector.load %arg2[%176, %c0_102] : memref<32x128xf32, #tpu.memory_space<vmem>>, vector<1x128xf32>
    %c0_103 = arith.constant 0 : index
    %c5 = arith.constant 5 : index
    %c0_104 = arith.constant 0 : index
    %178 = vector.load %arg5[%c0_103, %c5, %c0_104] : memref<4x8x128xf32, #tpu.memory_space<vmem>>, vector<1x1x128xf32>
    %179 = vector.shape_cast %178 : vector<1x1x128xf32> to vector<1x128xf32>
    %180 = vector.shape_cast %177 : vector<1x128xf32> to vector<1x1x128xf32>
    tpu.vector_store %arg5[%c0_103, %c5, %c0_104], %180 {strides = array<i32>} : memref<4x8x128xf32, #tpu.memory_space<vmem>>, vector<1x1x128xf32>,
    %c1_i32_105 = arith.constant 1 : i32
    %181 = arith.addi %172, %c1_i32_105 : i32
    %182 = arith.index_cast %181 : i32 to index
    %183 = memref.load %arg1[%182] : memref<64xi32, #tpu.memory_space<smem>>
    %184 = arith.index_cast %183 : i32 to index
    %c0_106 = arith.constant 0 : index
    %185 = vector.load %arg2[%184, %c0_106] : memref<32x128xf32, #tpu.memory_space<vmem>>, vector<1x128xf32>
    %c1_107 = arith.constant 1 : index
    %c5_108 = arith.constant 5 : index
    %c0_109 = arith.constant 0 : index
    %186 = vector.load %arg5[%c1_107, %c5_108, %c0_109] : memref<4x8x128xf32, #tpu.memory_space<vmem>>, vector<1x1x128xf32>
    %187 = vector.shape_cast %186 : vector<1x1x128xf32> to vector<1x128xf32>
    %188 = vector.shape_cast %185 : vector<1x128xf32> to vector<1x1x128xf32>
    tpu.vector_store %arg5[%c1_107, %c5_108, %c0_109], %188 {strides = array<i32>} : memref<4x8x128xf32, #tpu.memory_space<vmem>>, vector<1x1x128xf32>,
    %c2_i32_110 = arith.constant 2 : i32
    %189 = arith.addi %172, %c2_i32_110 : i32
    %190 = arith.index_cast %189 : i32 to index
    %191 = memref.load %arg1[%190] : memref<64xi32, #tpu.memory_space<smem>>
    %192 = arith.index_cast %191 : i32 to index
    %c0_111 = arith.constant 0 : index
    %193 = vector.load %arg2[%192, %c0_111] : memref<32x128xf32, #tpu.memory_space<vmem>>, vector<1x128xf32>
    %c2_112 = arith.constant 2 : index
    %c5_113 = arith.constant 5 : index
    %c0_114 = arith.constant 0 : index
    %194 = vector.load %arg5[%c2_112, %c5_113, %c0_114] : memref<4x8x128xf32, #tpu.memory_space<vmem>>, vector<1x1x128xf32>
    %195 = vector.shape_cast %194 : vector<1x1x128xf32> to vector<1x128xf32>
    %196 = vector.shape_cast %193 : vector<1x128xf32> to vector<1x1x128xf32>
    tpu.vector_store %arg5[%c2_112, %c5_113, %c0_114], %196 {strides = array<i32>} : memref<4x8x128xf32, #tpu.memory_space<vmem>>, vector<1x1x128xf32>,
    %c3_i32_115 = arith.constant 3 : i32
    %197 = arith.addi %172, %c3_i32_115 : i32
    %198 = arith.index_cast %197 : i32 to index
    %199 = memref.load %arg1[%198] : memref<64xi32, #tpu.memory_space<smem>>
    %200 = arith.index_cast %199 : i32 to index
    %c0_116 = arith.constant 0 : index
    %201 = vector.load %arg2[%200, %c0_116] : memref<32x128xf32, #tpu.memory_space<vmem>>, vector<1x128xf32>
    %c3_117 = arith.constant 3 : index
    %c5_118 = arith.constant 5 : index
    %c0_119 = arith.constant 0 : index
    %202 = vector.load %arg5[%c3_117, %c5_118, %c0_119] : memref<4x8x128xf32, #tpu.memory_space<vmem>>, vector<1x1x128xf32>
    %203 = vector.shape_cast %202 : vector<1x1x128xf32> to vector<1x128xf32>
    %204 = vector.shape_cast %201 : vector<1x128xf32> to vector<1x1x128xf32>
    tpu.vector_store %arg5[%c3_117, %c5_118, %c0_119], %204 {strides = array<i32>} : memref<4x8x128xf32, #tpu.memory_space<vmem>>, vector<1x1x128xf32>,
    %c6_i32 = arith.constant 6 : i32
    %205 = arith.addi %0, %c6_i32 : i32
    %c4_i32_120 = arith.constant 4 : i32
    %206 = arith.muli %205, %c4_i32_120 : i32
    %c0_i32_121 = arith.constant 0 : i32
    %207 = arith.addi %206, %c0_i32_121 : i32
    %208 = arith.index_cast %207 : i32 to index
    %209 = memref.load %arg1[%208] : memref<64xi32, #tpu.memory_space<smem>>
    %210 = arith.index_cast %209 : i32 to index
    %c0_122 = arith.constant 0 : index
    %211 = vector.load %arg2[%210, %c0_122] : memref<32x128xf32, #tpu.memory_space<vmem>>, vector<1x128xf32>
    %c0_123 = arith.constant 0 : index
    %c6 = arith.constant 6 : index
    %c0_124 = arith.constant 0 : index
    %212 = vector.load %arg5[%c0_123, %c6, %c0_124] : memref<4x8x128xf32, #tpu.memory_space<vmem>>, vector<1x1x128xf32>
    %213 = vector.shape_cast %212 : vector<1x1x128xf32> to vector<1x128xf32>
    %214 = vector.shape_cast %211 : vector<1x128xf32> to vector<1x1x128xf32>
    tpu.vector_store %arg5[%c0_123, %c6, %c0_124], %214 {strides = array<i32>} : memref<4x8x128xf32, #tpu.memory_space<vmem>>, vector<1x1x128xf32>,
    %c1_i32_125 = arith.constant 1 : i32
    %215 = arith.addi %206, %c1_i32_125 : i32
    %216 = arith.index_cast %215 : i32 to index
    %217 = memref.load %arg1[%216] : memref<64xi32, #tpu.memory_space<smem>>
    %218 = arith.index_cast %217 : i32 to index
    %c0_126 = arith.constant 0 : index
    %219 = vector.load %arg2[%218, %c0_126] : memref<32x128xf32, #tpu.memory_space<vmem>>, vector<1x128xf32>
    %c1_127 = arith.constant 1 : index
    %c6_128 = arith.constant 6 : index
    %c0_129 = arith.constant 0 : index
    %220 = vector.load %arg5[%c1_127, %c6_128, %c0_129] : memref<4x8x128xf32, #tpu.memory_space<vmem>>, vector<1x1x128xf32>
    %221 = vector.shape_cast %220 : vector<1x1x128xf32> to vector<1x128xf32>
    %222 = vector.shape_cast %219 : vector<1x128xf32> to vector<1x1x128xf32>
    tpu.vector_store %arg5[%c1_127, %c6_128, %c0_129], %222 {strides = array<i32>} : memref<4x8x128xf32, #tpu.memory_space<vmem>>, vector<1x1x128xf32>,
    %c2_i32_130 = arith.constant 2 : i32
    %223 = arith.addi %206, %c2_i32_130 : i32
    %224 = arith.index_cast %223 : i32 to index
    %225 = memref.load %arg1[%224] : memref<64xi32, #tpu.memory_space<smem>>
    %226 = arith.index_cast %225 : i32 to index
    %c0_131 = arith.constant 0 : index
    %227 = vector.load %arg2[%226, %c0_131] : memref<32x128xf32, #tpu.memory_space<vmem>>, vector<1x128xf32>
    %c2_132 = arith.constant 2 : index
    %c6_133 = arith.constant 6 : index
    %c0_134 = arith.constant 0 : index
    %228 = vector.load %arg5[%c2_132, %c6_133, %c0_134] : memref<4x8x128xf32, #tpu.memory_space<vmem>>, vector<1x1x128xf32>
    %229 = vector.shape_cast %228 : vector<1x1x128xf32> to vector<1x128xf32>
    %230 = vector.shape_cast %227 : vector<1x128xf32> to vector<1x1x128xf32>
    tpu.vector_store %arg5[%c2_132, %c6_133, %c0_134], %230 {strides = array<i32>} : memref<4x8x128xf32, #tpu.memory_space<vmem>>, vector<1x1x128xf32>,
    %c3_i32_135 = arith.constant 3 : i32
    %231 = arith.addi %206, %c3_i32_135 : i32
    %232 = arith.index_cast %231 : i32 to index
    %233 = memref.load %arg1[%232] : memref<64xi32, #tpu.memory_space<smem>>
    %234 = arith.index_cast %233 : i32 to index
    %c0_136 = arith.constant 0 : index
    %235 = vector.load %arg2[%234, %c0_136] : memref<32x128xf32, #tpu.memory_space<vmem>>, vector<1x128xf32>
    %c3_137 = arith.constant 3 : index
    %c6_138 = arith.constant 6 : index
    %c0_139 = arith.constant 0 : index
    %236 = vector.load %arg5[%c3_137, %c6_138, %c0_139] : memref<4x8x128xf32, #tpu.memory_space<vmem>>, vector<1x1x128xf32>
    %237 = vector.shape_cast %236 : vector<1x1x128xf32> to vector<1x128xf32>
    %238 = vector.shape_cast %235 : vector<1x128xf32> to vector<1x1x128xf32>
    tpu.vector_store %arg5[%c3_137, %c6_138, %c0_139], %238 {strides = array<i32>} : memref<4x8x128xf32, #tpu.memory_space<vmem>>, vector<1x1x128xf32>,
    %c7_i32 = arith.constant 7 : i32
    %239 = arith.addi %0, %c7_i32 : i32
    %c4_i32_140 = arith.constant 4 : i32
    %240 = arith.muli %239, %c4_i32_140 : i32
    %c0_i32_141 = arith.constant 0 : i32
    %241 = arith.addi %240, %c0_i32_141 : i32
    %242 = arith.index_cast %241 : i32 to index
    %243 = memref.load %arg1[%242] : memref<64xi32, #tpu.memory_space<smem>>
    %244 = arith.index_cast %243 : i32 to index
    %c0_142 = arith.constant 0 : index
    %245 = vector.load %arg2[%244, %c0_142] : memref<32x128xf32, #tpu.memory_space<vmem>>, vector<1x128xf32>
    %c0_143 = arith.constant 0 : index
    %c7 = arith.constant 7 : index
    %c0_144 = arith.constant 0 : index
    %246 = vector.load %arg5[%c0_143, %c7, %c0_144] : memref<4x8x128xf32, #tpu.memory_space<vmem>>, vector<1x1x128xf32>
    %247 = vector.shape_cast %246 : vector<1x1x128xf32> to vector<1x128xf32>
    %248 = vector.shape_cast %245 : vector<1x128xf32> to vector<1x1x128xf32>
    tpu.vector_store %arg5[%c0_143, %c7, %c0_144], %248 {strides = array<i32>} : memref<4x8x128xf32, #tpu.memory_space<vmem>>, vector<1x1x128xf32>,
    %c1_i32_145 = arith.constant 1 : i32
    %249 = arith.addi %240, %c1_i32_145 : i32
    %250 = arith.index_cast %249 : i32 to index
    %251 = memref.load %arg1[%250] : memref<64xi32, #tpu.memory_space<smem>>
    %252 = arith.index_cast %251 : i32 to index
    %c0_146 = arith.constant 0 : index
    %253 = vector.load %arg2[%252, %c0_146] : memref<32x128xf32, #tpu.memory_space<vmem>>, vector<1x128xf32>
    %c1_147 = arith.constant 1 : index
    %c7_148 = arith.constant 7 : index
    %c0_149 = arith.constant 0 : index
    %254 = vector.load %arg5[%c1_147, %c7_148, %c0_149] : memref<4x8x128xf32, #tpu.memory_space<vmem>>, vector<1x1x128xf32>
    %255 = vector.shape_cast %254 : vector<1x1x128xf32> to vector<1x128xf32>
    %256 = vector.shape_cast %253 : vector<1x128xf32> to vector<1x1x128xf32>
    tpu.vector_store %arg5[%c1_147, %c7_148, %c0_149], %256 {strides = array<i32>} : memref<4x8x128xf32, #tpu.memory_space<vmem>>, vector<1x1x128xf32>,
    %c2_i32_150 = arith.constant 2 : i32
    %257 = arith.addi %240, %c2_i32_150 : i32
    %258 = arith.index_cast %257 : i32 to index
    %259 = memref.load %arg1[%258] : memref<64xi32, #tpu.memory_space<smem>>
    %260 = arith.index_cast %259 : i32 to index
    %c0_151 = arith.constant 0 : index
    %261 = vector.load %arg2[%260, %c0_151] : memref<32x128xf32, #tpu.memory_space<vmem>>, vector<1x128xf32>
    %c2_152 = arith.constant 2 : index
    %c7_153 = arith.constant 7 : index
    %c0_154 = arith.constant 0 : index
    %262 = vector.load %arg5[%c2_152, %c7_153, %c0_154] : memref<4x8x128xf32, #tpu.memory_space<vmem>>, vector<1x1x128xf32>
    %263 = vector.shape_cast %262 : vector<1x1x128xf32> to vector<1x128xf32>
    %264 = vector.shape_cast %261 : vector<1x128xf32> to vector<1x1x128xf32>
    tpu.vector_store %arg5[%c2_152, %c7_153, %c0_154], %264 {strides = array<i32>} : memref<4x8x128xf32, #tpu.memory_space<vmem>>, vector<1x1x128xf32>,
    %c3_i32_155 = arith.constant 3 : i32
    %265 = arith.addi %240, %c3_i32_155 : i32
    %266 = arith.index_cast %265 : i32 to index
    %267 = memref.load %arg1[%266] : memref<64xi32, #tpu.memory_space<smem>>
    %268 = arith.index_cast %267 : i32 to index
    %c0_156 = arith.constant 0 : index
    %269 = vector.load %arg2[%268, %c0_156] : memref<32x128xf32, #tpu.memory_space<vmem>>, vector<1x128xf32>
    %c3_157 = arith.constant 3 : index
    %c7_158 = arith.constant 7 : index
    %c0_159 = arith.constant 0 : index
    %270 = vector.load %arg5[%c3_157, %c7_158, %c0_159] : memref<4x8x128xf32, #tpu.memory_space<vmem>>, vector<1x1x128xf32>
    %271 = vector.shape_cast %270 : vector<1x1x128xf32> to vector<1x128xf32>
    %272 = vector.shape_cast %269 : vector<1x128xf32> to vector<1x1x128xf32>
    tpu.vector_store %arg5[%c3_157, %c7_158, %c0_159], %272 {strides = array<i32>} : memref<4x8x128xf32, #tpu.memory_space<vmem>>, vector<1x1x128xf32>,
    %c0_160 = arith.constant 0 : index
    %c0_161 = arith.constant 0 : index
    %c0_162 = arith.constant 0 : index
    %273 = vector.load %arg5[%c0_160, %c0_161, %c0_162] : memref<4x8x128xf32, #tpu.memory_space<vmem>>, vector<1x8x128xf32>
    %274 = vector.shape_cast %273 : vector<1x8x128xf32> to vector<8x128xf32>
    %c1_163 = arith.constant 1 : index
    %c0_164 = arith.constant 0 : index
    %c0_165 = arith.constant 0 : index
    %275 = vector.load %arg5[%c1_163, %c0_164, %c0_165] : memref<4x8x128xf32, #tpu.memory_space<vmem>>, vector<1x8x128xf32>
    %276 = vector.shape_cast %275 : vector<1x8x128xf32> to vector<8x128xf32>
    %277 = arith.maximumf %274, %276 : vector<8x128xf32>
    %c2_166 = arith.constant 2 : index
    %c0_167 = arith.constant 0 : index
    %c0_168 = arith.constant 0 : index
    %278 = vector.load %arg5[%c2_166, %c0_167, %c0_168] : memref<4x8x128xf32, #tpu.memory_space<vmem>>, vector<1x8x128xf32>
    %279 = vector.shape_cast %278 : vector<1x8x128xf32> to vector<8x128xf32>
    %280 = arith.maximumf %277, %279 : vector<8x128xf32>
    %c3_169 = arith.constant 3 : index
    %c0_170 = arith.constant 0 : index
    %c0_171 = arith.constant 0 : index
    %281 = vector.load %arg5[%c3_169, %c0_170, %c0_171] : memref<4x8x128xf32, #tpu.memory_space<vmem>>, vector<1x8x128xf32>
    %282 = vector.shape_cast %281 : vector<1x8x128xf32> to vector<8x128xf32>
    %283 = arith.maximumf %280, %282 : vector<8x128xf32>
    %c0_172 = arith.constant 0 : index
    %c0_173 = arith.constant 0 : index
    %c0_174 = arith.constant 0 : index
    %284 = vector.load %arg5[%c0_172, %c0_173, %c0_174] : memref<4x8x128xf32, #tpu.memory_space<vmem>>, vector<1x8x128xf32>
    %285 = vector.shape_cast %284 : vector<1x8x128xf32> to vector<8x128xf32>
    %286 = arith.subf %285, %283 : vector<8x128xf32>
    %287 = math.exp %286 : vector<8x128xf32>
    %c0_175 = arith.constant 0 : index
    %c0_176 = arith.constant 0 : index
    %288 = vector.load %arg3[%c0_175, %c0_176] : memref<8x4xf32, #tpu.memory_space<vmem>>, vector<8x1xf32>
    %289 = vector.broadcast %288 : vector<8x1xf32> to vector<8x128xf32>
    %290 = arith.mulf %287, %289 : vector<8x128xf32>
    %c1_177 = arith.constant 1 : index
    %c0_178 = arith.constant 0 : index
    %c0_179 = arith.constant 0 : index
    %291 = vector.load %arg5[%c1_177, %c0_178, %c0_179] : memref<4x8x128xf32, #tpu.memory_space<vmem>>, vector<1x8x128xf32>
    %292 = vector.shape_cast %291 : vector<1x8x128xf32> to vector<8x128xf32>
    %293 = arith.subf %292, %283 : vector<8x128xf32>
    %294 = math.exp %293 : vector<8x128xf32>
    %c0_180 = arith.constant 0 : index
    %c1_181 = arith.constant 1 : index
    %295 = vector.load %arg3[%c0_180, %c1_181] : memref<8x4xf32, #tpu.memory_space<vmem>>, vector<8x1xf32>
    %296 = vector.broadcast %295 : vector<8x1xf32> to vector<8x128xf32>
    %297 = arith.mulf %294, %296 : vector<8x128xf32>
    %298 = arith.addf %290, %297 : vector<8x128xf32>
    %c2_182 = arith.constant 2 : index
    %c0_183 = arith.constant 0 : index
    %c0_184 = arith.constant 0 : index
    %299 = vector.load %arg5[%c2_182, %c0_183, %c0_184] : memref<4x8x128xf32, #tpu.memory_space<vmem>>, vector<1x8x128xf32>
    %300 = vector.shape_cast %299 : vector<1x8x128xf32> to vector<8x128xf32>
    %301 = arith.subf %300, %283 : vector<8x128xf32>
    %302 = math.exp %301 : vector<8x128xf32>
    %c0_185 = arith.constant 0 : index
    %c2_186 = arith.constant 2 : index
    %303 = vector.load %arg3[%c0_185, %c2_186] : memref<8x4xf32, #tpu.memory_space<vmem>>, vector<8x1xf32>
    %304 = vector.broadcast %303 : vector<8x1xf32> to vector<8x128xf32>
    %305 = arith.mulf %302, %304 : vector<8x128xf32>
    %306 = arith.addf %298, %305 : vector<8x128xf32>
    %c3_187 = arith.constant 3 : index
    %c0_188 = arith.constant 0 : index
    %c0_189 = arith.constant 0 : index
    %307 = vector.load %arg5[%c3_187, %c0_188, %c0_189] : memref<4x8x128xf32, #tpu.memory_space<vmem>>, vector<1x8x128xf32>
    %308 = vector.shape_cast %307 : vector<1x8x128xf32> to vector<8x128xf32>
    %309 = arith.subf %308, %283 : vector<8x128xf32>
    %310 = math.exp %309 : vector<8x128xf32>
    %c0_190 = arith.constant 0 : index
    %c3_191 = arith.constant 3 : index
    %311 = vector.load %arg3[%c0_190, %c3_191] : memref<8x4xf32, #tpu.memory_space<vmem>>, vector<8x1xf32>
    %312 = vector.broadcast %311 : vector<8x1xf32> to vector<8x128xf32>
    %313 = arith.mulf %310, %312 : vector<8x128xf32>
    %314 = arith.addf %306, %313 : vector<8x128xf32>
    %cst = arith.constant 1.000000e-10 : f32
    %315 = vector.broadcast %cst : f32 to vector<8x128xf32>
    %316 = arith.maximumf %314, %315 : vector<8x128xf32>
    %317 = math.log %316 : vector<8x128xf32>
    %318 = arith.addf %317, %283 : vector<8x128xf32>
    %c0_192 = arith.constant 0 : index
    %c0_193 = arith.constant 0 : index
    %319 = vector.load %arg4[%c0_192, %c0_193] : memref<8x128xf32, #tpu.memory_space<vmem>>, vector<8x128xf32>
    tpu.vector_store %arg4[%c0_192, %c0_193], %318 {strides = array<i32>} : memref<8x128xf32, #tpu.memory_space<vmem>>, vector<8x128xf32>,
    return
  }
  func.func @transform_0(%arg0: i32, %arg1: memref<64xi32, #tpu.memory_space<smem>>) -> (i32, i32) {
    %c0_i32 = arith.constant 0 : i32
    %c0_i32_0 = arith.constant 0 : i32
    %c0_i32_1 = arith.constant 0 : i32
    return %c0_i32, %c0_i32_0 : i32, i32
  }
  func.func @transform_1(%arg0: i32, %arg1: memref<64xi32, #tpu.memory_space<smem>>) -> (i32, i32) {
    %c0_i32 = arith.constant 0 : i32
    %c0_i32_0 = arith.constant 0 : i32
    return %arg0, %c0_i32 : i32, i32
  }
  func.func @transform_2(%arg0: i32, %arg1: memref<64xi32, #tpu.memory_space<smem>>) -> (i32, i32) {
    %c0_i32 = arith.constant 0 : i32
    %c0_i32_0 = arith.constant 0 : i32
    return %arg0, %c0_i32 : i32, i32
  }
}

</mosaic_0001>

<llo_original>
// kernel: mul.1
$region0: #{mul.1}
  #allocation0 [shape = 's32[1]{0}', space=sflag, size = 0x4, scoped, tag = 'scoped memory for mul.1']
  %s0 = inlined_call_operand.vmem [shape: f32[16,4], index: 0, kind: input, shape index: {}]
  %s1 = inlined_call_operand.vmem [shape: f32[16,4], index: 1, kind: input, shape index: {}]
  %s2 = inlined_call_operand.vmem [shape: f32[16,4], index: 2, kind: output, shape index: {}]
  %v3 = vld [vmem:[%s0] sm:$0xff]
  %v4 = vld [vmem:[%s1] sm:$0xff]
  %5 = xla_tuple %v3, %v4
  %6 = xla_tuple %5
  %v7 = vmul.f32 %v3, %v4
  %8 = xla_tuple %v7
  %9 = vst [vmem:[%s2] sm:$0xff] %v7
  %s10 = scalar_lea.vmem %s0, 8
  %v11 = vld [vmem:[%s10] sm:$0xff]
  %s12 = scalar_lea.vmem %s1, 8
  %v13 = vld [vmem:[%s12] sm:$0xff]
  %14 = xla_tuple %v11, %v13
  %15 = xla_tuple %14
  %v16 = vmul.f32 %v11, %v13
  %17 = xla_tuple %v16
  %s18 = scalar_lea.vmem %s2, 8
  %19 = vst [vmem:[%s18] sm:$0xff] %v16

// kernel: _sum_layer_forward_fused.1
$region0: #{_sum_layer_forward_fused.1}
  #allocation0 [shape = 'u32[]', space=smem, size = 0x4, offset = 0x4, fixed_abs, tag = 'smem constant byte address 0x4 - core index']
  #allocation1 [shape = 'u32[72,128]{1,0:T(1,128)}', space=vmem, size = 0x9000, scoped, tag = 'internal scratch']
  #allocation2 [shape = 'f32[4,8,128]{2,1,0:T(8,128)}', space=vmem, size = 0x4000, scoped, tag = 'scratch operand']
  #allocation3 [shape = 's32[1]{0}', space=sflag, size = 0x4, scoped, tag = 'scoped memory for _sum_layer_forward_fused.1']
  #allocation4 [shape = 'u8[512]{0}', space=smem, size = 0x200, scoped, tag = 'prefetched SMEM operand 0']
  %s0 = inlined_call_operand.vmem [shape: s32[64], index: 0, kind: input, shape index: {}]
  %s1 = inlined_call_operand.vmem [shape: f32[32,128], index: 1, kind: input, shape index: {}]
  %s2 = inlined_call_operand.vmem [shape: f32[16,4], index: 2, kind: input, shape index: {}]
  %s3 = inlined_call_operand.hbm [shape: f32[16,128], index: 3, kind: output, shape index: {}]
  %s4 = sld [smem:[#allocation0]]
  $region41: #{_sum_layer_forward_fused.1} parent=0
    _
  %s6 = ssub.s32 1, %s4
  %s7 = scalar_select 0, %s6, %s4
  %s9 = sshll.u32 %s0, 4
  %s10 = int_to_ptr.vmem [resolvable:$true] %s9
  %12 = dma.vmem_to_smem %s10, 16, [#allocation4], [#allocation3]
  %14 = dma.done [#allocation3], 16
  %15 = sfence
  $region1: #{_sum_layer_forward_fused.1} parent=0
    #allocation5 [shape = 'u8[8192]{0}', space=vmem, size = 0x2000, scoped, tag = 'output window, operand 0']
    #allocation6 [shape = 's32[2]{0}', space=sflag, size = 0x8, scoped, tag = 'scoped memory for _sum_layer_forward_fused.1']
    %16 = vsyncpa [#allocation6], 0
    %s17 = scalar_lea.sflag [#allocation6], 1
    %18 = vsyncpa %s17, 0
    loop: start=0, step=1, limit=4
    $region2: #{_sum_layer_forward_fused.1} parent=1 // loop_pre_header
      _
    $region3: #{_sum_layer_forward_fused.1} parent=1 // loop_header
      %s20 = sphi 0, %s24
      %p21 = scmp.ge.s32.totalorder %s20, 4
      %s28 = sphi 0, %s28
      %s30 = sphi 0, %s28
      %s31 = sphi 0, %s30
      %s45 = sphi 0, %s31
      %s51 = sphi 0, %s53
      %s54 = sphi 0, %s51
      %s55 = sphi 0, %s54
      %s71 = sphi 0, %s55
      %s77 = sphi 0, %s79
      %s80 = sphi 0, %s77
      %s81 = sphi 0, %s80
      %s97 = sphi 0, %s81
    $region4: #{_sum_layer_forward_fused.1} parent=1 // loop_header_branch
      %23 = sbr.rel (%p21) target = $region8
    $region5: #{_sum_layer_forward_fused.1} parent=1 // loop_body
      %s25 = ssub.s32 %s20, 1
      %s26 = ssub.s32 %s20, 2
      %s27 = sadd.s32 %s20, 1
      %s29 = sadd.s32 %s28, 1
      %p32 = scmp.eq.s32.totalorder %s20, 1
      %p33 = scmp.ne.s32.totalorder %s28, %s30
      %p34 = scmp.eq.s32.totalorder %s20, 0
      %p35 = por %p33, %p34
      %p36 = scmp.ne.s32.totalorder %s28, %s30
      %p37 = scmp.eq.s32.totalorder %s25, 1
      %p38 = por %p36, %p37
      %p39 = scmp.ne.s32.totalorder %s30, %s31
      %p40 = scmp.eq.s32.totalorder %s25, 0
      %p41 = por %p39, %p40
      %p42 = scmp.ne.s32.totalorder %s30, %s31
      %p43 = scmp.eq.s32.totalorder %s26, 1
      %p44 = por %p42, %p43
      %p46 = scmp.ne.s32.totalorder %s31, %s45
      %p47 = scmp.eq.s32.totalorder %s26, 0
      %p48 = por %p46, %p47
      %s49 = ssub.s32 %s20, %s27
      %p50 = scmp.eq.s32.totalorder %s49, 0
      %s52 = sadd.s32 %s51, 1
      %s53 = scalar_select %p50, %s51, %s52
      %p56 = pneg %p50
      %p57 = scmp.eq.s32.totalorder %s20, 1
      %p58 = por %p56, %p57
      %p59 = scmp.ne.s32.totalorder %s51, %s54
      %p60 = scmp.eq.s32.totalorder %s20, 0
      %p61 = por %p59, %p60
      %p62 = scmp.ne.s32.totalorder %s51, %s54
      %p63 = scmp.eq.s32.totalorder %s25, 1
      %p64 = por %p62, %p63
      %p65 = scmp.ne.s32.totalorder %s54, %s55
      %p66 = scmp.eq.s32.totalorder %s25, 0
      %p67 = por %p65, %p66
      %p68 = scmp.ne.s32.totalorder %s54, %s55
      %p69 = scmp.eq.s32.totalorder %s26, 1
      %p70 = por %p68, %p69
      %p72 = scmp.ne.s32.totalorder %s55, %s71
      %p73 = scmp.eq.s32.totalorder %s26, 0
      %p74 = por %p72, %p73
      %s75 = ssub.s32 %s20, %s27
      %p76 = scmp.eq.s32.totalorder %s75, 0
      %s78 = sadd.s32 %s77, 1
      %s79 = scalar_select %p76, %s77, %s78
      %p82 = pneg %p76
      %p83 = scmp.eq.s32.totalorder %s20, 1
      %p84 = por %p82, %p83
      %p85 = scmp.ne.s32.totalorder %s77, %s80
      %p86 = scmp.eq.s32.totalorder %s20, 0
      %p87 = por %p85, %p86
      %p88 = scmp.ne.s32.totalorder %s77, %s80
      %p89 = scmp.eq.s32.totalorder %s25, 1
      %p90 = por %p88, %p89
      %p91 = scmp.ne.s32.totalorder %s80, %s81
      %p92 = scmp.eq.s32.totalorder %s25, 0
      %p93 = por %p91, %p92
      %p94 = scmp.ne.s32.totalorder %s80, %s81
      %p95 = scmp.eq.s32.totalorder %s26, 1
      %p96 = por %p94, %p95
      %p98 = scmp.ne.s32.totalorder %s81, %s97
      %p99 = scmp.eq.s32.totalorder %s26, 0
      %p100 = por %p98, %p99
      %p101 = scmp.le.s32.totalorder 1, %s20
      %p102 = scmp.lt.s32.totalorder %s20, 3
      %p103 = pnand %p101, %p102
      %p104 = pneg %p103
      // Predicated region
      $region9: #{_sum_layer_forward_fused.1} parent=5 // pred_check
        _
      $region10: #{_sum_layer_forward_fused.1} parent=5 // pred_check_branch
        %106 = sbr.rel (%p103) target = $region12
      $region11: #{_sum_layer_forward_fused.1} parent=5 // pred_region
        %s107 = ssub.s32 %s20, 1
        // Predicated region
        $region13: #{_sum_layer_forward_fused.1} parent=11 // pred_check
          %p108 = pneg %p41
        $region14: #{_sum_layer_forward_fused.1} parent=11 // pred_check_branch
          %110 = sbr.rel (%p108) target = $region16
        $region15: #{_sum_layer_forward_fused.1} parent=11 // pred_region
          _
        $region16: #{_sum_layer_forward_fused.1} parent=11 // pred_fallthru
          _
      $region12: #{_sum_layer_forward_fused.1} parent=5 // pred_fallthru
        _
      %p111 = scmp.lt.s32.totalorder %s20, 2
      // Predicated region
      $region17: #{_sum_layer_forward_fused.1} parent=5 // pred_check
        %p112 = pneg %p111
      $region18: #{_sum_layer_forward_fused.1} parent=5 // pred_check_branch
        %114 = sbr.rel (%p112) target = $region20
      $region19: #{_sum_layer_forward_fused.1} parent=5 // pred_region
        // Predicated region
        $region21: #{_sum_layer_forward_fused.1} parent=19 // pred_check
          %p115 = pneg %p61
        $region22: #{_sum_layer_forward_fused.1} parent=19 // pred_check_branch
          %117 = sbr.rel (%p115) target = $region24
        $region23: #{_sum_layer_forward_fused.1} parent=19 // pred_region
          %p118 = scmp.lt.s32.totalorder %s20, 1
          %s119 = scalar_select %p118, %s20, 1
          %s120 = smul.addr %s119, 8
          %s121 = scalar_lea.vmem %s2, %s120
        $region24: #{_sum_layer_forward_fused.1} parent=19 // pred_fallthru
          _
      $region20: #{_sum_layer_forward_fused.1} parent=5 // pred_fallthru
        _
      %p122 = scmp.le.s32.totalorder 1, %s20
      %p123 = scmp.lt.s32.totalorder %s20, 3
      %p124 = pnand %p122, %p123
      %p125 = pneg %p124
      // Predicated region
      $region25: #{_sum_layer_forward_fused.1} parent=5 // pred_check
        _
      $region26: #{_sum_layer_forward_fused.1} parent=5 // pred_check_branch
        %127 = sbr.rel (%p124) target = $region28
      $region27: #{_sum_layer_forward_fused.1} parent=5 // pred_region
        %s128 = ssub.s32 %s20, 1
        %p129 = pneg %p41
        %p130 = pneg %p38
        %p131 = scmp.lt.s32.totalorder %s25, 1
        %s132 = scalar_select %p131, %s25, 1
        %s133 = smul.addr %s132, 8
        %s134 = scalar_lea.vmem %s2, %s133
        %p135 = pneg %p67
        %p136 = pneg %p64
        %p137 = pneg %p93
        %p138 = pneg %p90
        %s139 = sand.u32 %s80, 1
        %s140 = scalar_lea.sflag [#allocation6], %s139
        %s141 = sand.u32 %s80, 1
        %s142 = smul.addr %s141, 8
        %s143 = scalar_lea.vmem [#allocation5], %s142
        %p144 = scmp.lt.s32.totalorder %s25, 1
        %s145 = scalar_select %p144, %s25, 1
        %s146 = smul.addr %s145, 8
        %s147 = scalar_lea.vmem %s2, %s146
        %s148 = smul.u32 %s25, 8
        %s149 = smul.u32 %s25, 32
        %s150 = sld [smem:[#allocation4 + %s149]]
        %s151 = scalar_lea.vmem %s1, %s150
        %v152 = vld [vmem:[%s151] sm:$0x1]
        %153 = vst [vmem:[#allocation2] sm:$0x1] %v152
        %s154 = sadd.s32 %s149, 1
        %s155 = sld [smem:[#allocation4 + %s154]]
        %s156 = scalar_lea.vmem %s1, %s155
        %v157 = vld [vmem:[%s156] sm:$0x1]
        %s158 = scalar_lea.vmem [#allocation2], 8
        %159 = vst [vmem:[%s158] sm:$0x1] %v157
        %s160 = sadd.s32 %s149, 2
        %s161 = sld [smem:[#allocation4 + %s160]]
        %s162 = scalar_lea.vmem %s1, %s161
        %v163 = vld [vmem:[%s162] sm:$0x1]
        %s164 = scalar_lea.vmem [#allocation2], 16
        %165 = vst [vmem:[%s164] sm:$0x1] %v163
        %s166 = sadd.s32 %s149, 3
        %s167 = sld [smem:[#allocation4 + %s166]]
        %s168 = scalar_lea.vmem %s1, %s167
        %v169 = vld [vmem:[%s168] sm:$0x1]
        %s170 = scalar_lea.vmem [#allocation2], 24
        %171 = vst [vmem:[%s170] sm:$0x1] %v169
        %s172 = sadd.s32 %s148, 1
        %s173 = smul.u32 %s172, 4
        %s174 = sld [smem:[#allocation4 + %s173]]
        %s175 = scalar_lea.vmem %s1, %s174
        %v176 = vld [vmem:[%s175] sm:$0x1]
        %177 = vst [vmem:[#allocation2 + $0x1] sm:$0x1] %v176
        %s178 = sadd.s32 %s173, 1
        %s179 = sld [smem:[#allocation4 + %s178]]
        %s180 = scalar_lea.vmem %s1, %s179
        %v181 = vld [vmem:[%s180] sm:$0x1]
        %182 = vst [vmem:[%s158 + $0x1] sm:$0x1] %v181
        %s183 = sadd.s32 %s173, 2
        %s184 = sld [smem:[#allocation4 + %s183]]
        %s185 = scalar_lea.vmem %s1, %s184
        %v186 = vld [vmem:[%s185] sm:$0x1]
        %187 = vst [vmem:[%s164 + $0x1] sm:$0x1] %v186
        %s188 = sadd.s32 %s173, 3
        %s189 = sld [smem:[#allocation4 + %s188]]
        %s190 = scalar_lea.vmem %s1, %s189
        %v191 = vld [vmem:[%s190] sm:$0x1]
        %192 = vst [vmem:[%s170 + $0x1] sm:$0x1] %v191
        %s193 = sadd.s32 %s148, 2
        %s194 = smul.u32 %s193, 4
        %s195 = sld [smem:[#allocation4 + %s194]]
        %s196 = scalar_lea.vmem %s1, %s195
        %v197 = vld [vmem:[%s196] sm:$0x1]
        %198 = vst [vmem:[#allocation2 + $0x2] sm:$0x1] %v197
        %s199 = sadd.s32 %s194, 1
        %s200 = sld [smem:[#allocation4 + %s199]]
        %s201 = scalar_lea.vmem %s1, %s200
        %v202 = vld [vmem:[%s201] sm:$0x1]
        %203 = vst [vmem:[%s158 + $0x2] sm:$0x1] %v202
        %s204 = sadd.s32 %s194, 2
        %s205 = sld [smem:[#allocation4 + %s204]]
        %s206 = scalar_lea.vmem %s1, %s205
        %v207 = vld [vmem:[%s206] sm:$0x1]
        %208 = vst [vmem:[%s164 + $0x2] sm:$0x1] %v207
        %s209 = sadd.s32 %s194, 3
        %s210 = sld [smem:[#allocation4 + %s209]]
        %s211 = scalar_lea.vmem %s1, %s210
        %v212 = vld [vmem:[%s211] sm:$0x1]
        %213 = vst [vmem:[%s170 + $0x2] sm:$0x1] %v212
        %s214 = sadd.s32 %s148, 3
        %s215 = smul.u32 %s214, 4
        %s216 = sld [smem:[#allocation4 + %s215]]
        %s217 = scalar_lea.vmem %s1, %s216
        %v218 = vld [vmem:[%s217] sm:$0x1]
        %219 = vst [vmem:[#allocation2 + $0x3] sm:$0x1] %v218
        %s220 = sadd.s32 %s215, 1
        %s221 = sld [smem:[#allocation4 + %s220]]
        %s222 = scalar_lea.vmem %s1, %s221
        %v223 = vld [vmem:[%s222] sm:$0x1]
        %224 = vst [vmem:[%s158 + $0x3] sm:$0x1] %v223
        %s225 = sadd.s32 %s215, 2
        %s226 = sld [smem:[#allocation4 + %s225]]
        %s227 = scalar_lea.vmem %s1, %s226
        %v228 = vld [vmem:[%s227] sm:$0x1]
        %229 = vst [vmem:[%s164 + $0x3] sm:$0x1] %v228
        %s230 = sadd.s32 %s215, 3
        %s231 = sld [smem:[#allocation4 + %s230]]
        %s232 = scalar_lea.vmem %s1, %s231
        %v233 = vld [vmem:[%s232] sm:$0x1]
        %234 = vst [vmem:[%s170 + $0x3] sm:$0x1] %v233
        %s235 = sadd.s32 %s148, 4
        %s236 = smul.u32 %s235, 4
        %s237 = sld [smem:[#allocation4 + %s236]]
        %s238 = scalar_lea.vmem %s1, %s237
        %v239 = vld [vmem:[%s238] sm:$0x1]
        %240 = vst [vmem:[#allocation2 + $0x4] sm:$0x1] %v239
        %s241 = sadd.s32 %s236, 1
        %s242 = sld [smem:[#allocation4 + %s241]]
        %s243 = scalar_lea.vmem %s1, %s242
        %v244 = vld [vmem:[%s243] sm:$0x1]
        %245 = vst [vmem:[%s158 + $0x4] sm:$0x1] %v244
        %s246 = sadd.s32 %s236, 2
        %s247 = sld [smem:[#allocation4 + %s246]]
        %s248 = scalar_lea.vmem %s1, %s247
        %v249 = vld [vmem:[%s248] sm:$0x1]
        %250 = vst [vmem:[%s164 + $0x4] sm:$0x1] %v249
        %s251 = sadd.s32 %s236, 3
        %s252 = sld [smem:[#allocation4 + %s251]]
        %s253 = scalar_lea.vmem %s1, %s252
        %v254 = vld [vmem:[%s253] sm:$0x1]
        %255 = vst [vmem:[%s170 + $0x4] sm:$0x1] %v254
        %s256 = sadd.s32 %s148, 5
        %s257 = smul.u32 %s256, 4
        %s258 = sld [smem:[#allocation4 + %s257]]
        %s259 = scalar_lea.vmem %s1, %s258
        %v260 = vld [vmem:[%s259] sm:$0x1]
        %261 = vst [vmem:[#allocation2 + $0x5] sm:$0x1] %v260
        %s262 = sadd.s32 %s257, 1
        %s263 = sld [smem:[#allocation4 + %s262]]
        %s264 = scalar_lea.vmem %s1, %s263
        %v265 = vld [vmem:[%s264] sm:$0x1]
        %266 = vst [vmem:[%s158 + $0x5] sm:$0x1] %v265
        %s267 = sadd.s32 %s257, 2
        %s268 = sld [smem:[#allocation4 + %s267]]
        %s269 = scalar_lea.vmem %s1, %s268
        %v270 = vld [vmem:[%s269] sm:$0x1]
        %271 = vst [vmem:[%s164 + $0x5] sm:$0x1] %v270
        %s272 = sadd.s32 %s257, 3
        %s273 = sld [smem:[#allocation4 + %s272]]
        %s274 = scalar_lea.vmem %s1, %s273
        %v275 = vld [vmem:[%s274] sm:$0x1]
        %276 = vst [vmem:[%s170 + $0x5] sm:$0x1] %v275
        %s277 = sadd.s32 %s148, 6
        %s278 = smul.u32 %s277, 4
        %s279 = sld [smem:[#allocation4 + %s278]]
        %s280 = scalar_lea.vmem %s1, %s279
        %v281 = vld [vmem:[%s280] sm:$0x1]
        %282 = vst [vmem:[#allocation2 + $0x6] sm:$0x1] %v281
        %s283 = sadd.s32 %s278, 1
        %s284 = sld [smem:[#allocation4 + %s283]]
        %s285 = scalar_lea.vmem %s1, %s284
        %v286 = vld [vmem:[%s285] sm:$0x1]
        %287 = vst [vmem:[%s158 + $0x6] sm:$0x1] %v286
        %s288 = sadd.s32 %s278, 2
        %s289 = sld [smem:[#allocation4 + %s288]]
        %s290 = scalar_lea.vmem %s1, %s289
        %v291 = vld [vmem:[%s290] sm:$0x1]
        %292 = vst [vmem:[%s164 + $0x6] sm:$0x1] %v291
        %s293 = sadd.s32 %s278, 3
        %s294 = sld [smem:[#allocation4 + %s293]]
        %s295 = scalar_lea.vmem %s1, %s294
        %v296 = vld [vmem:[%s295] sm:$0x1]
        %297 = vst [vmem:[%s170 + $0x6] sm:$0x1] %v296
        %s298 = sadd.s32 %s148, 7
        %s299 = smul.u32 %s298, 4
        %s300 = sld [smem:[#allocation4 + %s299]]
        %s301 = scalar_lea.vmem %s1, %s300
        %v302 = vld [vmem:[%s301] sm:$0x1]
        %303 = vst [vmem:[#allocation2 + $0x7] sm:$0x1] %v302
        %s304 = sadd.s32 %s299, 1
        %s305 = sld [smem:[#allocation4 + %s304]]
        %s306 = scalar_lea.vmem %s1, %s305
        %v307 = vld [vmem:[%s306] sm:$0x1]
        %308 = vst [vmem:[%s158 + $0x7] sm:$0x1] %v307
        %s309 = sadd.s32 %s299, 2
        %s310 = sld [smem:[#allocation4 + %s309]]
        %s311 = scalar_lea.vmem %s1, %s310
        %v312 = vld [vmem:[%s311] sm:$0x1]
        %313 = vst [vmem:[%s164 + $0x7] sm:$0x1] %v312
        %s314 = sadd.s32 %s299, 3
        %s315 = sld [smem:[#allocation4 + %s314]]
        %s316 = scalar_lea.vmem %s1, %s315
        %v317 = vld [vmem:[%s316] sm:$0x1]
        %318 = vst [vmem:[%s170 + $0x7] sm:$0x1] %v317
        %v319 = vld [vmem:[#allocation2] sm:$0xff]
        %v320 = vld [vmem:[%s158] sm:$0xff]
        %v321 = vmax.f32 %v319, %v320
        %v322 = vld [vmem:[%s164] sm:$0xff]
        %v323 = vmax.f32 %v321, %v322
        %v324 = vld [vmem:[%s170] sm:$0xff]
        %v325 = vmax.f32 %v323, %v324
        %v326 = vsub.f32 %v319, %v325
        %v327 = vmul.f32 %v326, 1.442695
        %v328 = vpow.pop %v327
        %v329 = vld [vmem:[%s147] sm:$0xff]
        %331 = vset.pattern.permute.xlu0 0
        %332 = vperm.xlu0 %331, %v329
        %v333 = vpop.permute.xlu0 %332
        %v335 = vmul.f32 %v328, %v333
        %v336 = vsub.f32 %v320, %v325
        %v337 = vmul.f32 %v336, 1.442695
        %v338 = vpow.pop %v337
        %339 = vset.pattern.permute.xlu0 1
        %340 = vperm.xlu0 %339, %v329
        %v341 = vpop.permute.xlu0 %340
        %v343 = vmul.f32 %v338, %v341
        %v344 = vadd.f32 %v335, %v343
        %v345 = vsub.f32 %v322, %v325
        %v346 = vmul.f32 %v345, 1.442695
        %v347 = vpow.pop %v346
        %348 = vset.pattern.permute.xlu0 2
        %349 = vperm.xlu0 %348, %v329
        %v350 = vpop.permute.xlu0 %349
        %v352 = vmul.f32 %v347, %v350
        %v353 = vadd.f32 %v344, %v352
        %v354 = vsub.f32 %v324, %v325
        %v355 = vmul.f32 %v354, 1.442695
        %v356 = vpow.pop %v355
        %357 = vset.pattern.permute.xlu0 3
        %358 = vperm.xlu0 %357, %v329
        %v359 = vpop.permute.xlu0 %358
        %v361 = vmul.f32 %v356, %v359
        %v362 = vadd.f32 %v353, %v361
        %v363 = vmax.f32 %v362, 1e-10
        %v364 = vlog2.pop %v363
        %v365 = vmul.f32 %v364, 0.6931472
        %v366 = vadd.f32 %v365, %v325
        %367 = vst [vmem:[%s143] sm:$0xff] %v366
        %s368 = sand.u32 %s80, 1
        %s369 = scalar_lea.sflag [#allocation6], %s368
        %s370 = sand.u32 %s80, 1
        %s371 = smul.addr %s370, 8
        %s372 = scalar_lea.vmem [#allocation5], %s371
        // Predicated region
        $region29: #{_sum_layer_forward_fused.1} parent=27 // pred_check
          %p373 = pneg %p90
        $region30: #{_sum_layer_forward_fused.1} parent=27 // pred_check_branch
          %375 = sbr.rel (%p373) target = $region32
        $region31: #{_sum_layer_forward_fused.1} parent=27 // pred_region
          %377 = vsyncadd %s369, 0
          %s378 = smul.addr %s25, 8
          %s379 = scalar_lea.hbm %s3, %s378
          %s381 = sshll.u32 %s372, 4
          %s382 = int_to_ptr.vmem [resolvable:$true] %s381
          %s383 = sshll.u32 %s379, 4
          %s384 = int_to_ptr.hbm [resolvable:$true] %s383
          %386 = dma.vmem_to_hbm [thread:$0]  %s382, 128, %s384, %s369
        $region32: #{_sum_layer_forward_fused.1} parent=27 // pred_fallthru
          _
      $region28: #{_sum_layer_forward_fused.1} parent=5 // pred_fallthru
        _
      %p387 = scmp.le.s32.totalorder 2, %s20
      // Predicated region
      $region33: #{_sum_layer_forward_fused.1} parent=5 // pred_check
        %p388 = pneg %p387
      $region34: #{_sum_layer_forward_fused.1} parent=5 // pred_check_branch
        %390 = sbr.rel (%p388) target = $region36
      $region35: #{_sum_layer_forward_fused.1} parent=5 // pred_region
        %s391 = ssub.s32 %s20, 2
        // Predicated region
        $region37: #{_sum_layer_forward_fused.1} parent=35 // pred_check
          %p392 = pneg %p96
        $region38: #{_sum_layer_forward_fused.1} parent=35 // pred_check_branch
          %394 = sbr.rel (%p392) target = $region40
        $region39: #{_sum_layer_forward_fused.1} parent=35 // pred_region
          %s395 = sand.u32 %s81, 1
          %s396 = scalar_lea.sflag [#allocation6], %s395
          %s397 = sand.u32 %s81, 1
          %s398 = smul.addr %s397, 8
          %s399 = scalar_lea.vmem [#allocation5], %s398
          %401 = dma.done %s396, 128
        $region40: #{_sum_layer_forward_fused.1} parent=35 // pred_fallthru
          _
      $region36: #{_sum_layer_forward_fused.1} parent=5 // pred_fallthru
        _
    $region6: #{_sum_layer_forward_fused.1} parent=1 // loop_footer
      %s24 = sadd.s32 1, %s20
    $region7: #{_sum_layer_forward_fused.1} parent=1 // loop_footer_branch
      %19 = sbr.rel target = $region3
    $region8: #{_sum_layer_forward_fused.1} parent=1 // loop_exit
      _
    %402 = vsyncpa [#allocation6], 1
    %s403 = scalar_lea.sflag [#allocation6], 1
    %404 = vsyncpa %s403, 1

</llo_original>
